<compile_context>
chip_gen: v7x
topology: tpu7x:2x2x1
jax: 0.10.0
libtpu: 0.0.40
codegen_flags: <defaults>
</compile_context>

<pallas_src>
import numpy as np

import jax
import jax.numpy as jnp
from jax.experimental import pallas as pl
from jax.experimental.pallas import tpu as pltpu


def _moving_avg_kernel(a_ref, x_ref, o_ref):
    """One (batch, channel-tile) block per grid step.

    a_ref: (L_out, L)     banded averaging matrix (edge padding + stride folded in)
    x_ref: (1, L, TC)     input series block
    o_ref: (1, L_out, TC) moving-average output block
    """
    mean = jnp.dot(
        a_ref[...],
        x_ref[0, :, :].astype(jnp.float32),
        preferred_element_type=jnp.float32,
    )
    o_ref[0, :, :] = mean.astype(o_ref.dtype)


def _build_avg_matrix(L, kernel_size, stride):
    """A[i, j] = (# of times original step j appears in window i) / kernel_size.

    Window i covers padded indices [i*stride, i*stride + kernel_size); padded index p
    maps to original index clip(p - pad, 0, L-1), which reproduces the PyTorch
    front/end replication exactly (including even kernel sizes and stride > 1).
    """
    pad = (kernel_size - 1) // 2
    L_pad = L + 2 * pad
    L_out = (L_pad - kernel_size) // stride + 1
    src = np.clip(np.arange(L_pad) - pad, 0, L - 1)               # padded idx -> source idx
    win = np.arange(L_out)[:, None] * stride + np.arange(kernel_size)[None, :]
    rows = np.repeat(np.arange(L_out), kernel_size)
    cols = src[win.reshape(-1)]
    A = np.zeros((L_out, L), dtype=np.float32)
    np.add.at(A, (rows, cols), 1.0 / float(kernel_size))
    return A, L_out


def moving_avg(x, kernel_size, stride=1):
    """Pallas TPU equivalent of moving_avg(kernel_size, stride).forward(x).

    x: (B, L, C). Returns the moving average, shape (B, L_out, C).
    """
    B, L, C = x.shape
    A_np, L_out = _build_avg_matrix(L, kernel_size, stride)
    A = jnp.asarray(A_np)

    # Channel tile (lane dim): whole C when it is small / not 128-aligned (block equal to
    # the full dim is always legal), otherwise a lane-dense 128-multiple tile.
    if C % 128 == 0 and C > 512:
        TC = 512 if C % 512 == 0 else 128
    else:
        TC = C
    num_c = C // TC

    out = pl.pallas_call(
        _moving_avg_kernel,
        out_shape=jax.ShapeDtypeStruct((B, L_out, C), x.dtype),
        grid_spec=pltpu.PrefetchScalarGridSpec(
            num_scalar_prefetch=0,
            grid=(B, num_c),
            in_specs=[
                # Averaging matrix: constant index_map -> stays resident in VMEM.
                pl.BlockSpec((L_out, L), lambda b, c: (0, 0)),
                pl.BlockSpec((1, L, TC), lambda b, c: (b, 0, c)),
            ],
            out_specs=pl.BlockSpec((1, L_out, TC), lambda b, c: (b, 0, c)),
        ),
        compiler_params=pltpu.CompilerParams(
            dimension_semantics=("parallel", "parallel"),
        ),
    )(A, x)
    return out


def _reference(x, kernel_size, stride=1):
    """Pure-JAX reference mirroring the PyTorch forward (edge pad + AvgPool1d)."""
    pad = (kernel_size - 1) // 2
    front = jnp.repeat(x[:, 0:1, :], pad, axis=1)
    end = jnp.repeat(x[:, -1:, :], pad, axis=1)
    xp = jnp.concatenate([front, x, end], axis=1)
    L_pad = xp.shape[1]
    L_out = (L_pad - kernel_size) // stride + 1
    windows = jnp.stack(
        [xp[:, i * stride:i * stride + kernel_size, :] for i in range(L_out)],
        axis=1,
    )  # (B, L_out, k, C)
    return jnp.mean(windows, axis=2)


if __name__ == "__main__":
    key = jax.random.PRNGKey(0)
    B, L, C = 2, 16, 32
    x = jax.random.normal(key, (B, L, C), dtype=jnp.float32)

    # Standard case: odd kernel, stride 1 (L_out == L).
    k1, s1 = 5, 1
    y1 = moving_avg(x, k1, s1)
    jax.block_until_ready(y1)
    y1_ref = _reference(x, k1, s1)
    assert y1.shape == y1_ref.shape == (B, L, C)
    assert jnp.allclose(y1, y1_ref, atol=1e-5, rtol=1e-5)

    # General case: even kernel + stride > 1 (exercises the folded AvgPool semantics).
    k2, s2 = 4, 2
    y2 = moving_avg(x, k2, s2)
    jax.block_until_ready(y2)
    y2_ref = _reference(x, k2, s2)
    assert y2.shape == y2_ref.shape
    assert jnp.allclose(y2, y2_ref, atol=1e-5, rtol=1e-5)

    print("KERNEL_OK")
</pallas_src>

<mosaic_0001>
module attributes {stable_mosaic.version = 11 : i64} {
  func.func @_moving_avg_kernel(%arg0: i32, %arg1: i32, %arg2: memref<16x16xf32, #tpu.memory_space<vmem>>, %arg3: memref<1x16x32xf32, #tpu.memory_space<vmem>>, %arg4: memref<1x16x32xf32, #tpu.memory_space<vmem>>) attributes {dimension_semantics = [#tpu.dimension_semantics<parallel>, #tpu.dimension_semantics<parallel>], iteration_bounds = array<i64: 2, 1>, scalar_prefetch = 0 : i64, scratch_operands = 0 : i64, tpu.core_type = #tpu.core_type<tc>, window_params = [{pipeline_mode = #tpu.pipeline_mode<synchronous>, transform_indices = @transform_0, window_bounds = array<i64: 16, 16>}, {transform_indices = @transform_1, window_bounds = array<i64: 1, 16, 32>}, {transform_indices = @transform_2, window_bounds = array<i64: 1, 16, 32>}]} {
    %c0 = arith.constant 0 : index
    %c0_0 = arith.constant 0 : index
    %0 = vector.load %arg2[%c0, %c0_0] : memref<16x16xf32, #tpu.memory_space<vmem>>, vector<16x16xf32>
    %c0_1 = arith.constant 0 : index
    %c0_2 = arith.constant 0 : index
    %c0_3 = arith.constant 0 : index
    %1 = vector.load %arg3[%c0_1, %c0_2, %c0_3] : memref<1x16x32xf32, #tpu.memory_space<vmem>>, vector<1x16x32xf32>
    %2 = vector.shape_cast %1 : vector<1x16x32xf32> to vector<16x32xf32>
    %cst = arith.constant dense<0.000000e+00> : vector<16x32xf32>
    %3 = tpu.matmul %0, %2, %cst {dimension_numbers = #tpu.dot_dimension_numbers<[1], [0], [0], [1], [0, 0, 1, 1], [], []>} : vector<16x16xf32>, vector<16x32xf32>, vector<16x32xf32> -> vector<16x32xf32>
    %c0_4 = arith.constant 0 : index
    %c0_5 = arith.constant 0 : index
    %c0_6 = arith.constant 0 : index
    %4 = vector.load %arg4[%c0_4, %c0_5, %c0_6] : memref<1x16x32xf32, #tpu.memory_space<vmem>>, vector<1x16x32xf32>
    %5 = vector.shape_cast %4 : vector<1x16x32xf32> to vector<16x32xf32>
    %6 = vector.shape_cast %3 : vector<16x32xf32> to vector<1x16x32xf32>
    tpu.vector_store %arg4[%c0_4, %c0_5, %c0_6], %6 {strides = array<i32>} : memref<1x16x32xf32, #tpu.memory_space<vmem>>, vector<1x16x32xf32>,
    return
  }
  func.func @transform_0(%arg0: i32, %arg1: i32) -> (i32, i32) {
    %c0_i32 = arith.constant 0 : i32
    %c0_i32_0 = arith.constant 0 : i32
    %c0_i32_1 = arith.constant 0 : i32
    return %c0_i32, %c0_i32_0 : i32, i32
  }
  func.func @transform_1(%arg0: i32, %arg1: i32) -> (i32, i32, i32) {
    %c0_i32 = arith.constant 0 : i32
    %c0_i32_0 = arith.constant 0 : i32
    return %arg0, %c0_i32, %arg1 : i32, i32, i32
  }
  func.func @transform_2(%arg0: i32, %arg1: i32) -> (i32, i32, i32) {
    %c0_i32 = arith.constant 0 : i32
    %c0_i32_0 = arith.constant 0 : i32
    return %arg0, %c0_i32, %arg1 : i32, i32, i32
  }
}

</mosaic_0001>

<llo_original>
// kernel: tpu_custom_call.1
$region0: #{tpu_custom_call.1}
  #allocation0 [shape = 'u32[]', space=smem, size = 0x4, offset = 0x4, fixed_abs, tag = 'smem constant byte address 0x4 - core index']
  #allocation1 [shape = 'u32[144,128]{1,0:T(1,128)}', space=vmem, size = 0x12000, scoped, tag = 'internal scratch']
  %s0 = inlined_call_operand.hbm [shape: f32[16,16], index: 0, kind: input, shape index: {}]
  %s1 = inlined_call_operand.hbm [shape: f32[2,16,32], index: 1, kind: input, shape index: {}]
  %s2 = inlined_call_operand.hbm [shape: f32[2,16,32], index: 2, kind: output, shape index: {}]
  %s3 = sld [smem:[#allocation0]]
  $region49: #{tpu_custom_call.1} parent=0
    _
  %s5 = ssub.s32 1, %s3
  %s6 = scalar_select 0, %s5, %s3
  $region1: #{tpu_custom_call.1} parent=0
    #allocation2 [shape = 'u8[8192]{0}', space=vmem, size = 0x2000, scoped, tag = 'input window, operand 0, single buffered']
    #allocation3 [shape = 's32[2]{0}', space=sflag, size = 0x8, scoped, tag = 'scoped memory for tpu_custom_call.1']
    #allocation4 [shape = 's32[2]{0}', space=sflag, size = 0x8, scoped, tag = 'scoped memory for tpu_custom_call.1']
    #allocation5 [shape = 'u8[16384]{0}', space=vmem, size = 0x4000, scoped, tag = 'input window, operand 1']
    #allocation6 [shape = 's32[2]{0}', space=sflag, size = 0x8, scoped, tag = 'scoped memory for tpu_custom_call.1']
    #allocation7 [shape = 'u8[16384]{0}', space=vmem, size = 0x4000, scoped, tag = 'output window, operand 0']
    %7 = vsyncpa [#allocation3], 0
    %8 = vsyncpa [#allocation6], 0
    %s9 = scalar_lea.sflag [#allocation6], 1
    %10 = vsyncpa %s9, 0
    %11 = vsyncpa [#allocation4], 0
    %s12 = scalar_lea.sflag [#allocation4], 1
    %13 = vsyncpa %s12, 0
    loop: start=0, step=1, limit=4
    $region2: #{tpu_custom_call.1} parent=1 // loop_pre_header
      _
    $region3: #{tpu_custom_call.1} parent=1 // loop_header
      %s15 = sphi 0, %s19
      %p16 = scmp.ge.s32.totalorder %s15, 4
      %s22 = sphi 0, %s34
      %s23 = sphi 0, %s30
      %s24 = sphi 0, %s22
      %s25 = sphi 0, %s23
      %s26 = sphi 0, %s24
      %s27 = sphi 0, %s25
      %s35 = sphi 0, %s35
      %s37 = sphi 0, %s35
      %s38 = sphi 0, %s37
      %s52 = sphi 0, %s38
      %s60 = sphi 0, %s62
      %s63 = sphi 0, %s60
      %s64 = sphi 0, %s63
      %s80 = sphi 0, %s64
      %s88 = sphi 0, %s90
      %s91 = sphi 0, %s88
      %s92 = sphi 0, %s91
      %s108 = sphi 0, %s92
    $region4: #{tpu_custom_call.1} parent=1 // loop_header_branch
      %18 = sbr.rel (%p16) target = $region8
    $region5: #{tpu_custom_call.1} parent=1 // loop_body
      %s20 = ssub.s32 %s15, 1
      %s21 = ssub.s32 %s15, 2
      %s28 = sadd.s32 1, %s23
      %p29 = scmp.ge.s32.totalorder %s28, 1
      %s30 = scalar_select %p29, 0, %s28
      %s31 = sadd.s32 1, %s22
      %s32 = scalar_select %p29, %s31, %s22
      %p33 = scmp.ge.s32.totalorder %s32, 2
      %s34 = scalar_select %p33, 0, %s32
      %s36 = sadd.s32 %s35, 1
      %p39 = scmp.eq.s32.totalorder %s15, 1
      %p40 = scmp.ne.s32.totalorder %s35, %s37
      %p41 = scmp.eq.s32.totalorder %s15, 0
      %p42 = por %p40, %p41
      %p43 = scmp.ne.s32.totalorder %s35, %s37
      %p44 = scmp.eq.s32.totalorder %s20, 1
      %p45 = por %p43, %p44
      %p46 = scmp.ne.s32.totalorder %s37, %s38
      %p47 = scmp.eq.s32.totalorder %s20, 0
      %p48 = por %p46, %p47
      %p49 = scmp.ne.s32.totalorder %s37, %s38
      %p50 = scmp.eq.s32.totalorder %s21, 1
      %p51 = por %p49, %p50
      %p53 = scmp.ne.s32.totalorder %s38, %s52
      %p54 = scmp.eq.s32.totalorder %s21, 0
      %p55 = por %p53, %p54
      %s56 = ssub.s32 %s22, %s34
      %s57 = ssub.s32 %s23, %s30
      %s58 = sor.u32 %s56, %s57
      %p59 = scmp.eq.s32.totalorder %s58, 0
      %s61 = sadd.s32 %s60, 1
      %s62 = scalar_select %p59, %s60, %s61
      %p65 = pneg %p59
      %p66 = scmp.eq.s32.totalorder %s15, 1
      %p67 = por %p65, %p66
      %p68 = scmp.ne.s32.totalorder %s60, %s63
      %p69 = scmp.eq.s32.totalorder %s15, 0
      %p70 = por %p68, %p69
      %p71 = scmp.ne.s32.totalorder %s60, %s63
      %p72 = scmp.eq.s32.totalorder %s20, 1
      %p73 = por %p71, %p72
      %p74 = scmp.ne.s32.totalorder %s63, %s64
      %p75 = scmp.eq.s32.totalorder %s20, 0
      %p76 = por %p74, %p75
      %p77 = scmp.ne.s32.totalorder %s63, %s64
      %p78 = scmp.eq.s32.totalorder %s21, 1
      %p79 = por %p77, %p78
      %p81 = scmp.ne.s32.totalorder %s64, %s80
      %p82 = scmp.eq.s32.totalorder %s21, 0
      %p83 = por %p81, %p82
      %s84 = ssub.s32 %s22, %s34
      %s85 = ssub.s32 %s23, %s30
      %s86 = sor.u32 %s84, %s85
      %p87 = scmp.eq.s32.totalorder %s86, 0
      %s89 = sadd.s32 %s88, 1
      %s90 = scalar_select %p87, %s88, %s89
      %p93 = pneg %p87
      %p94 = scmp.eq.s32.totalorder %s15, 1
      %p95 = por %p93, %p94
      %p96 = scmp.ne.s32.totalorder %s88, %s91
      %p97 = scmp.eq.s32.totalorder %s15, 0
      %p98 = por %p96, %p97
      %p99 = scmp.ne.s32.totalorder %s88, %s91
      %p100 = scmp.eq.s32.totalorder %s20, 1
      %p101 = por %p99, %p100
      %p102 = scmp.ne.s32.totalorder %s91, %s92
      %p103 = scmp.eq.s32.totalorder %s20, 0
      %p104 = por %p102, %p103
      %p105 = scmp.ne.s32.totalorder %s91, %s92
      %p106 = scmp.eq.s32.totalorder %s21, 1
      %p107 = por %p105, %p106
      %p109 = scmp.ne.s32.totalorder %s92, %s108
      %p110 = scmp.eq.s32.totalorder %s21, 0
      %p111 = por %p109, %p110
      %p112 = scmp.le.s32.totalorder 1, %s15
      %p113 = scmp.lt.s32.totalorder %s15, 3
      %p114 = pnand %p112, %p113
      %p115 = pneg %p114
      // Predicated region
      $region9: #{tpu_custom_call.1} parent=5 // pred_check
        _
      $region10: #{tpu_custom_call.1} parent=5 // pred_check_branch
        %117 = sbr.rel (%p114) target = $region12
      $region11: #{tpu_custom_call.1} parent=5 // pred_region
        %s118 = ssub.s32 %s15, 1
        // Predicated region
        $region13: #{tpu_custom_call.1} parent=11 // pred_check
          %p119 = pneg %p48
        $region14: #{tpu_custom_call.1} parent=11 // pred_check_branch
          %121 = sbr.rel (%p119) target = $region16
        $region15: #{tpu_custom_call.1} parent=11 // pred_region
          %s123 = ssub.s32 256, 256
          %124 = vsyncadd [#allocation3], %s123
          %s125 = sshll.u32 [#allocation2], 4
          %s126 = int_to_ptr.vmem [resolvable:$true] %s125
          %131 = dma.hbm_to_vmem [thread:$0]  %s0, 256, %s126, [#allocation3], 128, 128, 8
        $region16: #{tpu_custom_call.1} parent=11 // pred_fallthru
          _
      $region12: #{tpu_custom_call.1} parent=5 // pred_fallthru
        _
      %p132 = scmp.lt.s32.totalorder %s15, 2
      // Predicated region
      $region17: #{tpu_custom_call.1} parent=5 // pred_check
        %p133 = pneg %p132
      $region18: #{tpu_custom_call.1} parent=5 // pred_check_branch
        %135 = sbr.rel (%p133) target = $region20
      $region19: #{tpu_custom_call.1} parent=5 // pred_region
        // Predicated region
        $region21: #{tpu_custom_call.1} parent=19 // pred_check
          %p136 = pneg %p70
        $region22: #{tpu_custom_call.1} parent=19 // pred_check_branch
          %138 = sbr.rel (%p136) target = $region24
        $region23: #{tpu_custom_call.1} parent=19 // pred_region
          %s139 = sand.u32 %s60, 1
          %s140 = scalar_lea.sflag [#allocation6], %s139
          %s141 = sand.u32 %s60, 1
          %s142 = smul.addr %s141, 16
          %s143 = scalar_lea.vmem [#allocation5], %s142
          %s145 = ssub.s32 256, 256
          %146 = vsyncadd %s140, %s145
          %s147 = smul.addr %s22, 2
          %s148 = sadd.s32 %s23, %s147
          %s149 = smul.addr %s148, 128
          %s150 = scalar_lea.hbm %s1, %s149
          %s151 = sshll.u32 %s143, 4
          %s152 = int_to_ptr.vmem [resolvable:$true] %s151
          %157 = dma.hbm_to_vmem [thread:$0]  %s150, 256, %s152, %s140, 128, 128, 8
        $region24: #{tpu_custom_call.1} parent=19 // pred_fallthru
          _
      $region20: #{tpu_custom_call.1} parent=5 // pred_fallthru
        _
      %p158 = scmp.le.s32.totalorder 1, %s15
      %p159 = scmp.lt.s32.totalorder %s15, 3
      %p160 = pnand %p158, %p159
      %p161 = pneg %p160
      // Predicated region
      $region25: #{tpu_custom_call.1} parent=5 // pred_check
        _
      $region26: #{tpu_custom_call.1} parent=5 // pred_check_branch
        %163 = sbr.rel (%p160) target = $region28
      $region27: #{tpu_custom_call.1} parent=5 // pred_region
        %s164 = ssub.s32 %s15, 1
        // Predicated region
        $region29: #{tpu_custom_call.1} parent=27 // pred_check
          %p165 = pneg %p48
        $region30: #{tpu_custom_call.1} parent=27 // pred_check_branch
          %167 = sbr.rel (%p165) target = $region32
        $region31: #{tpu_custom_call.1} parent=27 // pred_region
          %168 = dma.done [#allocation3], 256
        $region32: #{tpu_custom_call.1} parent=27 // pred_fallthru
          _
        %s169 = sand.u32 %s63, 1
        %s170 = scalar_lea.sflag [#allocation6], %s169
        %s171 = sand.u32 %s63, 1
        %s172 = smul.addr %s171, 16
        %s173 = scalar_lea.vmem [#allocation5], %s172
        // Predicated region
        $region33: #{tpu_custom_call.1} parent=27 // pred_check
          %p174 = pneg %p76
        $region34: #{tpu_custom_call.1} parent=27 // pred_check_branch
          %176 = sbr.rel (%p174) target = $region36
        $region35: #{tpu_custom_call.1} parent=27 // pred_region
          %177 = dma.done %s170, 256
        $region36: #{tpu_custom_call.1} parent=27 // pred_fallthru
          _
        %p178 = pneg %p48
        %p179 = pneg %p45
        %s180 = sand.u32 %s63, 1
        %s181 = scalar_lea.sflag [#allocation6], %s180
        %s182 = sand.u32 %s63, 1
        %s183 = smul.addr %s182, 16
        %s184 = scalar_lea.vmem [#allocation5], %s183
        %p185 = pneg %p76
        %p186 = pneg %p73
        %p187 = pneg %p104
        %p188 = pneg %p101
        %s189 = sand.u32 %s91, 1
        %s190 = scalar_lea.sflag [#allocation4], %s189
        %s191 = sand.u32 %s91, 1
        %s192 = smul.addr %s191, 16
        %s193 = scalar_lea.vmem [#allocation7], %s192
        %v194 = vld [vmem:[#allocation2] sm:$0xff]
        %v195 = vld [vmem:[#allocation2 + $0x8] sm:$0xff]
        %v196 = vld [vmem:[%s173] sm:$0xff]
        %v197 = vld [vmem:[%s173 + $0x8] sm:$0xff]
        %vm198 = vcmask 130048
        %v200 = vsel %vm198, %v194, 0
        %v203 = vsel %vm198, %v195, 0
        %205 = vmatprep.subr.mxu0 0.0
        %206 = vmatpush1.msra.mxu0 %v196
        %207 = vmatprep.subr.mxu0 0.0
        %208 = vmatpush1.msra.mxu0 %v197
        %209 = vmatprep.subr.mxu0 0.0
        %210 = vmatpush1.msra.mxu0 0.0
        %211 = vmatprep.subr.mxu0 0.0
        %212 = vmatpush1.msra.mxu0 0.0
        %213 = vmatprep.subr.mxu0 0.0
        %214 = vmatpush1.msra.mxu0 0.0
        %215 = vmatprep.subr.mxu0 0.0
        %216 = vmatpush1.msra.mxu0 0.0
        %217 = vmatprep.subr.mxu0 0.0
        %218 = vmatpush1.msra.mxu0 0.0
        %219 = vmatprep.subr.mxu0 0.0
        %220 = vmatpush1.msra.mxu0 0.0
        %221 = vmatprep.subr.mxu0 0.0
        %222 = vmatpush1.msra.mxu0 0.0
        %223 = vmatprep.subr.mxu0 0.0
        %224 = vmatpush1.msra.mxu0 0.0
        %225 = vmatprep.subr.mxu0 0.0
        %226 = vmatpush1.msra.mxu0 0.0
        %227 = vmatprep.subr.mxu0 0.0
        %228 = vmatpush1.msra.mxu0 0.0
        %229 = vmatprep.subr.mxu0 0.0
        %230 = vmatpush1.msra.mxu0 0.0
        %231 = vmatprep.subr.mxu0 0.0
        %232 = vmatpush1.msra.mxu0 0.0
        %233 = vmatprep.subr.mxu0 0.0
        %234 = vmatpush1.msra.mxu0 0.0
        %235 = vmatprep.subr.mxu0 0.0
        %236 = vmatpush1.msra.mxu0 0.0
        %237 = vmatprep.subr.mxu0 0.0
        %238 = vmatpush1.msra.mxu0 0.0
        %239 = vmatprep.subr.mxu0 0.0
        %240 = vmatpush1.msra.mxu0 0.0
        %241 = vmatprep.subr.mxu0 0.0
        %242 = vmatpush1.msra.mxu0 0.0
        %243 = vmatprep.subr.mxu0 0.0
        %244 = vmatpush1.msra.mxu0 0.0
        %245 = vmatprep.subr.mxu0 0.0
        %246 = vmatpush1.msra.mxu0 0.0
        %247 = vmatprep.subr.mxu0 0.0
        %248 = vmatpush1.msra.mxu0 0.0
        %249 = vmatprep.subr.mxu0 0.0
        %250 = vmatpush1.msra.mxu0 0.0
        %251 = vmatprep.subr.mxu0 0.0
        %252 = vmatpush1.msra.mxu0 0.0
        %253 = vmatprep.subr.mxu0 0.0
        %254 = vmatpush1.msra.mxu0 0.0
        %255 = vmatprep.subr.mxu0 0.0
        %256 = vmatpush1.msra.mxu0 0.0
        %257 = vmatprep.subr.mxu0 0.0
        %258 = vmatpush1.msra.mxu0 0.0
        %259 = vmatprep.subr.mxu0 0.0
        %260 = vmatpush1.msra.mxu0 0.0
        %261 = vmatprep.subr.mxu0 0.0
        %262 = vmatpush1.msra.mxu0 0.0
        %263 = vmatprep.subr.mxu0 0.0
        %264 = vmatpush1.msra.mxu0 0.0
        %265 = vmatprep.subr.mxu0 0.0
        %266 = vmatpush1.msra.mxu0 0.0
        %267 = vmatprep.subr.mxu0 0.0
        %268 = vmatpush1.msra.mxu0 0.0
        %269 = vmatprep.mubr.f32.mxu0 0.0
        %270 = vmatmul.mubr.f32.gmra.mrb[0].mxu0 %v200
        %v271 = vpop.f32.mrb[0].mxu0
        %v272 = vadd.f32 0.0, %v271
        %v273 = vpop.f32.mrb[0].mxu0
        %274 = vmatprep.mubr.f32.mxu0 0.0
        %275 = vmatmul.mubr.f32.gmra.mrb[0].mxu0 %v203
        %v276 = vpop.f32.mrb[0].mxu0
        %v277 = vadd.f32 0.0, %v276
        %v278 = vpop.f32.mrb[0].mxu0
        %279 = vdwg.mxu0
        %vm280 = vcmask 261120
        %281 = vst.msk [vmem:[%s193] sm:$0xff] %vm280, %v272
        %282 = vst.msk [vmem:[%s193 + $0x8] sm:$0xff] %vm280, %v277
        %s283 = sand.u32 %s91, 1
        %s284 = scalar_lea.sflag [#allocation4], %s283
        %s285 = sand.u32 %s91, 1
        %s286 = smul.addr %s285, 16
        %s287 = scalar_lea.vmem [#allocation7], %s286
        // Predicated region
        $region37: #{tpu_custom_call.1} parent=27 // pred_check
          %p288 = pneg %p101
        $region38: #{tpu_custom_call.1} parent=27 // pred_check_branch
          %290 = sbr.rel (%p288) target = $region40
        $region39: #{tpu_custom_call.1} parent=27 // pred_region
          %s292 = ssub.s32 256, 256
          %293 = vsyncadd %s284, %s292
          %s294 = smul.addr %s24, 2
          %s295 = sadd.s32 %s25, %s294
          %s296 = smul.addr %s295, 128
          %s297 = scalar_lea.hbm %s2, %s296
          %s298 = sshll.u32 %s287, 4
          %s299 = int_to_ptr.vmem [resolvable:$true] %s298
          %304 = dma.vmem_to_hbm [thread:$0]  %s299, 256, %s297, %s284, 128, 128, 8
        $region40: #{tpu_custom_call.1} parent=27 // pred_fallthru
          _
      $region28: #{tpu_custom_call.1} parent=5 // pred_fallthru
        _
      %p305 = scmp.le.s32.totalorder 2, %s15
      // Predicated region
      $region41: #{tpu_custom_call.1} parent=5 // pred_check
        %p306 = pneg %p305
      $region42: #{tpu_custom_call.1} parent=5 // pred_check_branch
        %308 = sbr.rel (%p306) target = $region44
      $region43: #{tpu_custom_call.1} parent=5 // pred_region
        %s309 = ssub.s32 %s15, 2
        // Predicated region
        $region45: #{tpu_custom_call.1} parent=43 // pred_check
          %p310 = pneg %p107
        $region46: #{tpu_custom_call.1} parent=43 // pred_check_branch
          %312 = sbr.rel (%p310) target = $region48
        $region47: #{tpu_custom_call.1} parent=43 // pred_region
          %s313 = sand.u32 %s92, 1
          %s314 = scalar_lea.sflag [#allocation4], %s313
          %s315 = sand.u32 %s92, 1
          %s316 = smul.addr %s315, 16
          %s317 = scalar_lea.vmem [#allocation7], %s316
          %318 = dma.done %s314, 256
        $region48: #{tpu_custom_call.1} parent=43 // pred_fallthru
          _
      $region44: #{tpu_custom_call.1} parent=5 // pred_fallthru
        _
    $region6: #{tpu_custom_call.1} parent=1 // loop_footer
      %s19 = sadd.s32 1, %s15
    $region7: #{tpu_custom_call.1} parent=1 // loop_footer_branch
      %14 = sbr.rel target = $region3
    $region8: #{tpu_custom_call.1} parent=1 // loop_exit
      _
    %319 = vsyncpa [#allocation3], 1
    %s320 = scalar_lea.sflag [#allocation3], 1
    %321 = vsyncpa %s320, 1
    %322 = vsyncpa [#allocation6], 1
    %s323 = scalar_lea.sflag [#allocation6], 1
    %324 = vsyncpa %s323, 1
    %325 = vsyncpa [#allocation4], 1
    %s326 = scalar_lea.sflag [#allocation4], 1
    %327 = vsyncpa %s326, 1

</llo_original>
